<compile_context>
chip_gen: v7x
topology: tpu7x:2x2x1
jax: 0.10.0
libtpu: 0.0.40
codegen_flags: <defaults>
</compile_context>

<pallas_src>
import functools

import jax
import jax.numpy as jnp
from jax.experimental import pallas as pl
from jax.experimental.pallas import tpu as pltpu


# ---------------------------------------------------------------------------
# Pallas kernel: fused channel-sum / channel-max / 1x1 conv / sigmoid / scale
# ---------------------------------------------------------------------------
def _spatial_attention_kernel(params_ref, x_ref, o_ref):
    # params_ref: (3,) f32 in SMEM -> [w_avg / C, w_max, bias]
    # x_ref / o_ref: (BT, C, TS) in VMEM (spatial axis lane-dense)
    x = x_ref[...]                                              # native dtype
    s = jnp.sum(x.astype(jnp.float32), axis=1, keepdims=True)   # f32 channel sum
    mx = jnp.max(x, axis=1, keepdims=True).astype(jnp.float32)  # channel max
    logit = params_ref[0] * s + params_ref[1] * mx + params_ref[2]
    mask = jax.nn.sigmoid(logit)                                # EUP transcendental
    # final scale in the input dtype (halves VALU/store bytes for bf16 inputs)
    o_ref[...] = (x * mask.astype(x.dtype)).astype(o_ref.dtype)


# ---------------------------------------------------------------------------
# Generation-aware tiling policy
# ---------------------------------------------------------------------------
def _vmem_policy():
    """Returns (target_block_bytes, vmem_limit_bytes, vmem_capacity_bytes)."""
    try:
        cap = int(pltpu.get_tpu_info().vmem_capacity_bytes)
    except Exception:
        cap = 64 << 20                       # conservative fallback (v7x-safe)
    if cap <= (64 << 20):                    # v7x-class: 64 MiB VMEM per TensorCore
        return 2 << 20, 48 << 20, cap
    return 4 << 20, 96 << 20, cap            # v5e / v6e: 128 MiB VMEM


def _plan_tiles(b, c, hw_p, itemsize, target_block_bytes):
    """Pick (batch_tile, spatial_tile).  hw_p is a multiple of 128."""
    row_bytes = c * itemsize
    # largest 128-multiple spatial tile within the byte target that divides hw_p
    ts = min(hw_p, max(128, (target_block_bytes // row_bytes) // 128 * 128))
    while hw_p % ts != 0:
        ts -= 128
    # pack several batch items per grid step if a whole map is still small
    bt = 1
    if ts == hw_p and b > 1:
        bt = max(1, min(b, target_block_bytes // (row_bytes * hw_p)))
        while b % bt != 0:
            bt -= 1
    # keep at least 2 grid steps when possible (v7x has 2 TensorCores per chip)
    if (b // bt) * (hw_p // ts) < 2:
        if bt > 1:
            bt = b // 2
            while b % bt != 0:
                bt -= 1
        elif b == 1 and hw_p // ts == 1 and hw_p >= 256:
            ts = max(128, (hw_p // 2) // 128 * 128)
            while hw_p % ts != 0:
                ts -= 128
    return bt, ts


# ---------------------------------------------------------------------------
# pallas_call wrapper
# ---------------------------------------------------------------------------
@functools.partial(jax.jit, static_argnames=("bt", "ts", "hw_p", "vmem_limit"))
def _pallas_spatial_attention(x3, params, *, bt, ts, hw_p, vmem_limit):
    b, c, hw = x3.shape
    if hw_p != hw:
        # pad spatial axis to a multiple of 128 -> lane-dense (unmasked) stores
        x3 = jnp.pad(x3, ((0, 0), (0, 0), (0, hw_p - hw)))
    itemsize = jnp.dtype(x3.dtype).itemsize
    grid = (b // bt, hw_p // ts)
    cost = pl.CostEstimate(
        flops=4 * b * c * hw_p,                        # reduces + scale (advisory)
        transcendentals=b * hw_p,                      # sigmoid per pixel
        bytes_accessed=2 * b * c * hw_p * itemsize,    # one read + one write of x
    )
    out = pl.pallas_call(
        _spatial_attention_kernel,
        out_shape=jax.ShapeDtypeStruct((b, c, hw_p), x3.dtype),
        grid_spec=pltpu.PrefetchScalarGridSpec(
            num_scalar_prefetch=0,
            grid=grid,
            in_specs=[
                # tiny conv params: resident in SMEM for the whole grid
                pl.BlockSpec(memory_space=pltpu.MemorySpace.SMEM),
                # x: (batch tile, full-C, spatial tile) — lane-dense spatial axis
                pl.BlockSpec((bt, c, ts), lambda i, j: (i, 0, j)),
            ],
            out_specs=pl.BlockSpec((bt, c, ts), lambda i, j: (i, 0, j)),
        ),
        compiler_params=pltpu.CompilerParams(
            dimension_semantics=("parallel", "parallel"),
            vmem_limit_bytes=vmem_limit),
        cost_estimate=cost,
    )(params, x3)
    if hw_p != hw:
        out = out[:, :, :hw]
    return out


# ---------------------------------------------------------------------------
# Module-facing wrapper (NCHW in / NCHW out, matching PyTorch)
# ---------------------------------------------------------------------------
def spatial_attention(x, conv_w, conv_b):
    """x: (B, C, H, W); conv_w: (1, 2, 1, 1) [avg-weight, max-weight]; conv_b: (1,)."""
    b, c, h, w = x.shape
    hw = h * w
    hw_p = ((hw + 127) // 128) * 128
    itemsize = jnp.dtype(x.dtype).itemsize

    target_block_bytes, vmem_limit, vmem_cap = _vmem_policy()
    bt, ts = _plan_tiles(b, c, hw_p, itemsize, target_block_bytes)
    # never let a (double-buffered) block silently exceed the stated VMEM limit
    block_bytes = bt * c * ts * itemsize
    vmem_limit = int(max(vmem_limit, min(vmem_cap, 6 * block_bytes + (2 << 20))))

    # fold 1/C into the avg weight so the kernel uses a plain channel sum
    w2 = conv_w.reshape(2).astype(jnp.float32)
    params = jnp.concatenate(
        [w2[0:1] / c, w2[1:2], conv_b.reshape(1).astype(jnp.float32)])

    out = _pallas_spatial_attention(
        x.reshape(b, c, hw), params, bt=bt, ts=ts, hw_p=hw_p, vmem_limit=vmem_limit)
    return out.reshape(b, c, h, w)


def spatial_attention_ref(x, conv_w, conv_b):
    """Pure-JAX reference of the same math (for verification)."""
    avg = jnp.mean(x, axis=1, keepdims=True)
    mx = jnp.max(x, axis=1, keepdims=True)
    mask = jax.nn.sigmoid(conv_w[0, 0, 0, 0] * avg
                          + conv_w[0, 1, 0, 0] * mx
                          + conv_b[0])
    return x * mask


if __name__ == "__main__":
    key = jax.random.PRNGKey(0)
    k1, k2, k3 = jax.random.split(key, 3)

    # Small shapes consistent with the module: NCHW feature map.
    b, c, h, w = 2, 4, 16, 16
    x = jax.random.normal(k1, (b, c, h, w), jnp.float32)
    # Conv2d(2, 1, kernel_size=1) weights + bias
    conv_w = jax.random.normal(k2, (1, 2, 1, 1), jnp.float32)
    conv_b = 0.1 * jax.random.normal(k3, (1,), jnp.float32)

    out = jax.block_until_ready(spatial_attention(x, conv_w, conv_b))
    ref = spatial_attention_ref(x, conv_w, conv_b)
    assert out.shape == (b, c, h, w)
    assert bool(jnp.all(jnp.isfinite(out)))
    assert bool(jnp.allclose(out, ref, rtol=2e-3, atol=2e-3))

    # Also exercise the non-128-multiple spatial path (pad to 128 + slice back),
    # typical of 25x25 tracking-head maps.
    x2 = jax.random.normal(k1, (1, 8, 25, 25), jnp.float32)
    out2 = jax.block_until_ready(spatial_attention(x2, conv_w, conv_b))
    ref2 = spatial_attention_ref(x2, conv_w, conv_b)
    assert out2.shape == x2.shape
    assert bool(jnp.allclose(out2, ref2, rtol=2e-3, atol=2e-3))

    print("KERNEL_OK")
</pallas_src>

<mosaic_0001>
module attributes {stable_mosaic.version = 11 : i64} {
  func.func @_spatial_attention_kernel(%arg0: i32, %arg1: i32, %arg2: memref<3xf32, #tpu.memory_space<smem>>, %arg3: memref<1x4x256xf32, #tpu.memory_space<vmem>>, %arg4: memref<1x4x256xf32, #tpu.memory_space<vmem>>) attributes {dimension_semantics = [#tpu.dimension_semantics<parallel>, #tpu.dimension_semantics<parallel>], iteration_bounds = array<i64: 2, 1>, scalar_prefetch = 0 : i64, scratch_operands = 0 : i64, tpu.core_type = #tpu.core_type<tc>, window_params = [{transform_indices = @transform_0, window_bounds = array<i64: 3>}, {transform_indices = @transform_1, window_bounds = array<i64: 1, 4, 256>}, {transform_indices = @transform_2, window_bounds = array<i64: 1, 4, 256>}]} {
    %c0 = arith.constant 0 : index
    %c0_0 = arith.constant 0 : index
    %c0_1 = arith.constant 0 : index
    %0 = vector.load %arg3[%c0, %c0_0, %c0_1] : memref<1x4x256xf32, #tpu.memory_space<vmem>>, vector<1x4x256xf32>
    %cst = arith.constant dense<0.000000e+00> : vector<1x256xf32>
    %1 = vector.multi_reduction <add>, %0, %cst [1] : vector<1x4x256xf32> to vector<1x256xf32>
    %2 = vector.shape_cast %1 : vector<1x256xf32> to vector<1x1x256xf32>
    %cst_2 = arith.constant dense<0xFF800000> : vector<1x256xf32>
    %3 = vector.multi_reduction <maximumf>, %0, %cst_2 [1] : vector<1x4x256xf32> to vector<1x256xf32>
    %4 = vector.shape_cast %3 : vector<1x256xf32> to vector<1x1x256xf32>
    %c0_3 = arith.constant 0 : index
    %5 = memref.load %arg2[%c0_3] : memref<3xf32, #tpu.memory_space<smem>>
    %6 = vector.broadcast %5 : f32 to vector<1x1x256xf32>
    %7 = arith.mulf %6, %2 : vector<1x1x256xf32>
    %c1 = arith.constant 1 : index
    %8 = memref.load %arg2[%c1] : memref<3xf32, #tpu.memory_space<smem>>
    %9 = vector.broadcast %8 : f32 to vector<1x1x256xf32>
    %10 = arith.mulf %9, %4 : vector<1x1x256xf32>
    %11 = arith.addf %7, %10 : vector<1x1x256xf32>
    %c2 = arith.constant 2 : index
    %12 = memref.load %arg2[%c2] : memref<3xf32, #tpu.memory_space<smem>>
    %13 = vector.broadcast %12 : f32 to vector<1x1x256xf32>
    %14 = arith.addf %11, %13 : vector<1x1x256xf32>
    %15 = arith.negf %14 : vector<1x1x256xf32>
    %16 = math.exp %15 : vector<1x1x256xf32>
    %cst_4 = arith.constant 1.000000e+00 : f32
    %17 = vector.broadcast %cst_4 : f32 to vector<1x1x256xf32>
    %18 = arith.addf %17, %16 : vector<1x1x256xf32>
    %19 = arith.divf %17, %18 : vector<1x1x256xf32>
    %20 = vector.broadcast %19 : vector<1x1x256xf32> to vector<1x4x256xf32>
    %21 = arith.mulf %0, %20 : vector<1x4x256xf32>
    %c0_5 = arith.constant 0 : index
    %c0_6 = arith.constant 0 : index
    %c0_7 = arith.constant 0 : index
    %22 = vector.load %arg4[%c0_5, %c0_6, %c0_7] : memref<1x4x256xf32, #tpu.memory_space<vmem>>, vector<1x4x256xf32>
    tpu.vector_store %arg4[%c0_5, %c0_6, %c0_7], %21 {strides = array<i32>} : memref<1x4x256xf32, #tpu.memory_space<vmem>>, vector<1x4x256xf32>,
    return
  }
  func.func @transform_0(%arg0: i32, %arg1: i32) -> i32 {
    %c0_i32 = arith.constant 0 : i32
    %c0_i32_0 = arith.constant 0 : i32
    return %c0_i32 : i32
  }
  func.func @transform_1(%arg0: i32, %arg1: i32) -> (i32, i32, i32) {
    %c0_i32 = arith.constant 0 : i32
    %c0_i32_0 = arith.constant 0 : i32
    return %arg0, %c0_i32, %arg1 : i32, i32, i32
  }
  func.func @transform_2(%arg0: i32, %arg1: i32) -> (i32, i32, i32) {
    %c0_i32 = arith.constant 0 : i32
    %c0_i32_0 = arith.constant 0 : i32
    return %arg0, %c0_i32, %arg1 : i32, i32, i32
  }
}

</mosaic_0001>

<llo_original>
// kernel: _pallas_spatial_attention.1
$region0: #{_pallas_spatial_attention.1}
  #allocation0 [shape = 'u32[]', space=smem, size = 0x4, offset = 0x4, fixed_abs, tag = 'smem constant byte address 0x4 - core index']
  #allocation1 [shape = 'u32[144,128]{1,0:T(1,128)}', space=vmem, size = 0x12000, scoped, tag = 'internal scratch']
  %s0 = inlined_call_operand.vmem [shape: f32[3], index: 0, kind: input, shape index: {}]
  %s1 = inlined_call_operand.hbm [shape: f32[2,4,256], index: 1, kind: input, shape index: {}]
  %s2 = inlined_call_operand.hbm [shape: f32[2,4,256], index: 2, kind: output, shape index: {}]
  %s3 = sld [smem:[#allocation0]]
  $region49: #{_pallas_spatial_attention.1} parent=0
    _
  %s5 = ssub.s32 1, %s3
  %s6 = scalar_select 0, %s5, %s3
  $region1: #{_pallas_spatial_attention.1} parent=0
    #allocation2 [shape = 'u8[512]{0}', space=smem, size = 0x200, scoped, tag = 'input window, operand 0, single buffered']
    #allocation3 [shape = 's32[2]{0}', space=sflag, size = 0x8, scoped, tag = 'scoped memory for _pallas_spatial_attention.1']
    #allocation4 [shape = 's32[2]{0}', space=sflag, size = 0x8, scoped, tag = 'scoped memory for _pallas_spatial_attention.1']
    #allocation5 [shape = 's32[2]{0}', space=sflag, size = 0x8, scoped, tag = 'scoped memory for _pallas_spatial_attention.1']
    #allocation6 [shape = 'u8[8192]{0}', space=vmem, size = 0x2000, scoped, tag = 'input window, operand 1']
    #allocation7 [shape = 'u8[8192]{0}', space=vmem, size = 0x2000, scoped, tag = 'output window, operand 0']
    %7 = vsyncpa [#allocation5], 0
    %8 = vsyncpa [#allocation3], 0
    %s9 = scalar_lea.sflag [#allocation3], 1
    %10 = vsyncpa %s9, 0
    %11 = vsyncpa [#allocation4], 0
    %s12 = scalar_lea.sflag [#allocation4], 1
    %13 = vsyncpa %s12, 0
    loop: start=0, step=1, limit=4
    $region2: #{_pallas_spatial_attention.1} parent=1 // loop_pre_header
      _
    $region3: #{_pallas_spatial_attention.1} parent=1 // loop_header
      %s15 = sphi 0, %s19
      %p16 = scmp.ge.s32.totalorder %s15, 4
      %s22 = sphi 0, %s34
      %s23 = sphi 0, %s30
      %s24 = sphi 0, %s22
      %s25 = sphi 0, %s23
      %s26 = sphi 0, %s24
      %s27 = sphi 0, %s25
      %s35 = sphi 0, %s35
      %s37 = sphi 0, %s35
      %s38 = sphi 0, %s37
      %s52 = sphi 0, %s38
      %s60 = sphi 0, %s62
      %s63 = sphi 0, %s60
      %s64 = sphi 0, %s63
      %s80 = sphi 0, %s64
      %s88 = sphi 0, %s90
      %s91 = sphi 0, %s88
      %s92 = sphi 0, %s91
      %s108 = sphi 0, %s92
    $region4: #{_pallas_spatial_attention.1} parent=1 // loop_header_branch
      %18 = sbr.rel (%p16) target = $region8
    $region5: #{_pallas_spatial_attention.1} parent=1 // loop_body
      %s20 = ssub.s32 %s15, 1
      %s21 = ssub.s32 %s15, 2
      %s28 = sadd.s32 1, %s23
      %p29 = scmp.ge.s32.totalorder %s28, 1
      %s30 = scalar_select %p29, 0, %s28
      %s31 = sadd.s32 1, %s22
      %s32 = scalar_select %p29, %s31, %s22
      %p33 = scmp.ge.s32.totalorder %s32, 2
      %s34 = scalar_select %p33, 0, %s32
      %s36 = sadd.s32 %s35, 1
      %p39 = scmp.eq.s32.totalorder %s15, 1
      %p40 = scmp.ne.s32.totalorder %s35, %s37
      %p41 = scmp.eq.s32.totalorder %s15, 0
      %p42 = por %p40, %p41
      %p43 = scmp.ne.s32.totalorder %s35, %s37
      %p44 = scmp.eq.s32.totalorder %s20, 1
      %p45 = por %p43, %p44
      %p46 = scmp.ne.s32.totalorder %s37, %s38
      %p47 = scmp.eq.s32.totalorder %s20, 0
      %p48 = por %p46, %p47
      %p49 = scmp.ne.s32.totalorder %s37, %s38
      %p50 = scmp.eq.s32.totalorder %s21, 1
      %p51 = por %p49, %p50
      %p53 = scmp.ne.s32.totalorder %s38, %s52
      %p54 = scmp.eq.s32.totalorder %s21, 0
      %p55 = por %p53, %p54
      %s56 = ssub.s32 %s22, %s34
      %s57 = ssub.s32 %s23, %s30
      %s58 = sor.u32 %s56, %s57
      %p59 = scmp.eq.s32.totalorder %s58, 0
      %s61 = sadd.s32 %s60, 1
      %s62 = scalar_select %p59, %s60, %s61
      %p65 = pneg %p59
      %p66 = scmp.eq.s32.totalorder %s15, 1
      %p67 = por %p65, %p66
      %p68 = scmp.ne.s32.totalorder %s60, %s63
      %p69 = scmp.eq.s32.totalorder %s15, 0
      %p70 = por %p68, %p69
      %p71 = scmp.ne.s32.totalorder %s60, %s63
      %p72 = scmp.eq.s32.totalorder %s20, 1
      %p73 = por %p71, %p72
      %p74 = scmp.ne.s32.totalorder %s63, %s64
      %p75 = scmp.eq.s32.totalorder %s20, 0
      %p76 = por %p74, %p75
      %p77 = scmp.ne.s32.totalorder %s63, %s64
      %p78 = scmp.eq.s32.totalorder %s21, 1
      %p79 = por %p77, %p78
      %p81 = scmp.ne.s32.totalorder %s64, %s80
      %p82 = scmp.eq.s32.totalorder %s21, 0
      %p83 = por %p81, %p82
      %s84 = ssub.s32 %s22, %s34
      %s85 = ssub.s32 %s23, %s30
      %s86 = sor.u32 %s84, %s85
      %p87 = scmp.eq.s32.totalorder %s86, 0
      %s89 = sadd.s32 %s88, 1
      %s90 = scalar_select %p87, %s88, %s89
      %p93 = pneg %p87
      %p94 = scmp.eq.s32.totalorder %s15, 1
      %p95 = por %p93, %p94
      %p96 = scmp.ne.s32.totalorder %s88, %s91
      %p97 = scmp.eq.s32.totalorder %s15, 0
      %p98 = por %p96, %p97
      %p99 = scmp.ne.s32.totalorder %s88, %s91
      %p100 = scmp.eq.s32.totalorder %s20, 1
      %p101 = por %p99, %p100
      %p102 = scmp.ne.s32.totalorder %s91, %s92
      %p103 = scmp.eq.s32.totalorder %s20, 0
      %p104 = por %p102, %p103
      %p105 = scmp.ne.s32.totalorder %s91, %s92
      %p106 = scmp.eq.s32.totalorder %s21, 1
      %p107 = por %p105, %p106
      %p109 = scmp.ne.s32.totalorder %s92, %s108
      %p110 = scmp.eq.s32.totalorder %s21, 0
      %p111 = por %p109, %p110
      %p112 = scmp.le.s32.totalorder 1, %s15
      %p113 = scmp.lt.s32.totalorder %s15, 3
      %p114 = pnand %p112, %p113
      %p115 = pneg %p114
      // Predicated region
      $region9: #{_pallas_spatial_attention.1} parent=5 // pred_check
        _
      $region10: #{_pallas_spatial_attention.1} parent=5 // pred_check_branch
        %117 = sbr.rel (%p114) target = $region12
      $region11: #{_pallas_spatial_attention.1} parent=5 // pred_region
        %s118 = ssub.s32 %s15, 1
        // Predicated region
        $region13: #{_pallas_spatial_attention.1} parent=11 // pred_check
          %p119 = pneg %p48
        $region14: #{_pallas_spatial_attention.1} parent=11 // pred_check_branch
          %121 = sbr.rel (%p119) target = $region16
        $region15: #{_pallas_spatial_attention.1} parent=11 // pred_region
          %s123 = ssub.s32 16, 16
          %124 = vsyncadd [#allocation5], %s123
          %s126 = sshll.u32 %s0, 4
          %s127 = int_to_ptr.vmem [resolvable:$true] %s126
          %129 = dma.vmem_to_smem %s127, 16, [#allocation2], [#allocation5]
        $region16: #{_pallas_spatial_attention.1} parent=11 // pred_fallthru
          _
      $region12: #{_pallas_spatial_attention.1} parent=5 // pred_fallthru
        _
      %p130 = scmp.lt.s32.totalorder %s15, 2
      // Predicated region
      $region17: #{_pallas_spatial_attention.1} parent=5 // pred_check
        %p131 = pneg %p130
      $region18: #{_pallas_spatial_attention.1} parent=5 // pred_check_branch
        %133 = sbr.rel (%p131) target = $region20
      $region19: #{_pallas_spatial_attention.1} parent=5 // pred_region
        // Predicated region
        $region21: #{_pallas_spatial_attention.1} parent=19 // pred_check
          %p134 = pneg %p70
        $region22: #{_pallas_spatial_attention.1} parent=19 // pred_check_branch
          %136 = sbr.rel (%p134) target = $region24
        $region23: #{_pallas_spatial_attention.1} parent=19 // pred_region
          %s137 = sand.u32 %s60, 1
          %s138 = scalar_lea.sflag [#allocation3], %s137
          %s139 = sand.u32 %s60, 1
          %s140 = smul.addr %s139, 8
          %s141 = scalar_lea.vmem [#allocation6], %s140
          %s142 = smul.u32 2, %s23
          %s144 = ssub.s32 128, 128
          %145 = vsyncadd %s138, %s144
          %s146 = smul.addr %s22, 2
          %s147 = sadd.s32 %s142, %s146
          %s148 = smul.addr %s147, 64
          %s149 = scalar_lea.hbm %s1, %s148
          %s151 = sshll.u32 %s141, 4
          %s152 = int_to_ptr.vmem [resolvable:$true] %s151
          %154 = dma.hbm_to_vmem [thread:$0]  %s149, 128, %s152, %s138
        $region24: #{_pallas_spatial_attention.1} parent=19 // pred_fallthru
          _
      $region20: #{_pallas_spatial_attention.1} parent=5 // pred_fallthru
        _
      %p155 = scmp.le.s32.totalorder 1, %s15
      %p156 = scmp.lt.s32.totalorder %s15, 3
      %p157 = pnand %p155, %p156
      %p158 = pneg %p157
      // Predicated region
      $region25: #{_pallas_spatial_attention.1} parent=5 // pred_check
        _
      $region26: #{_pallas_spatial_attention.1} parent=5 // pred_check_branch
        %160 = sbr.rel (%p157) target = $region28
      $region27: #{_pallas_spatial_attention.1} parent=5 // pred_region
        %s161 = ssub.s32 %s15, 1
        // Predicated region
        $region29: #{_pallas_spatial_attention.1} parent=27 // pred_check
          %p162 = pneg %p48
        $region30: #{_pallas_spatial_attention.1} parent=27 // pred_check_branch
          %164 = sbr.rel (%p162) target = $region32
        $region31: #{_pallas_spatial_attention.1} parent=27 // pred_region
          %165 = dma.done [#allocation5], 16
        $region32: #{_pallas_spatial_attention.1} parent=27 // pred_fallthru
          _
        %s166 = sand.u32 %s63, 1
        %s167 = scalar_lea.sflag [#allocation3], %s166
        %s168 = sand.u32 %s63, 1
        %s169 = smul.addr %s168, 8
        %s170 = scalar_lea.vmem [#allocation6], %s169
        // Predicated region
        $region33: #{_pallas_spatial_attention.1} parent=27 // pred_check
          %p171 = pneg %p76
        $region34: #{_pallas_spatial_attention.1} parent=27 // pred_check_branch
          %173 = sbr.rel (%p171) target = $region36
        $region35: #{_pallas_spatial_attention.1} parent=27 // pred_region
          %174 = dma.done %s167, 128
        $region36: #{_pallas_spatial_attention.1} parent=27 // pred_fallthru
          _
        %175 = sfence
        %p176 = pneg %p48
        %p177 = pneg %p45
        %s178 = sand.u32 %s63, 1
        %s179 = scalar_lea.sflag [#allocation3], %s178
        %s180 = sand.u32 %s63, 1
        %s181 = smul.addr %s180, 8
        %s182 = scalar_lea.vmem [#allocation6], %s181
        %p183 = pneg %p76
        %p184 = pneg %p73
        %p185 = pneg %p104
        %p186 = pneg %p101
        %s187 = sand.u32 %s91, 1
        %s188 = scalar_lea.sflag [#allocation4], %s187
        %s189 = sand.u32 %s91, 1
        %s190 = smul.addr %s189, 8
        %s191 = scalar_lea.vmem [#allocation7], %s190
        %s192 = smul.u32 2, %s25
        %s193 = smul.u32 2, %s25
        %v194 = vld [vmem:[%s170] sm:$0xff]
        %v196 = vcombine.high %v194, %v194
        %vm198 = vcmask 1043456
        %v199 = vsel %vm198, %v194, 0.0
        %v200 = vrot.slane %v199, 4
        %v201 = vadd.f32 %v199, %v200
        %v202 = vrot.slane %v201, 2
        %v203 = vadd.f32 %v201, %v202
        %v204 = vrot.slane %v203, 1
        %v205 = vadd.f32 %v203, %v204
        %v206 = vsel %vm198, %v196, 0.0
        %v207 = vrot.slane %v206, 4
        %v208 = vadd.f32 %v206, %v207
        %v209 = vrot.slane %v208, 2
        %v210 = vadd.f32 %v208, %v209
        %v211 = vrot.slane %v210, 1
        %v212 = vadd.f32 %v210, %v211
        %v213 = vsel %vm198, %v194, -inf
        %v214 = vrot.slane %v213, 4
        %v215 = vmax.f32 %v213, %v214
        %v216 = vrot.slane %v215, 2
        %v217 = vmax.f32 %v215, %v216
        %v218 = vrot.slane %v217, 1
        %v219 = vmax.f32 %v217, %v218
        %v220 = vsel %vm198, %v196, -inf
        %v221 = vrot.slane %v220, 4
        %v222 = vmax.f32 %v220, %v221
        %v223 = vrot.slane %v222, 2
        %v224 = vmax.f32 %v222, %v223
        %v225 = vrot.slane %v224, 1
        %v226 = vmax.f32 %v224, %v225
        %s227 = sld [smem:[#allocation2]]
        %v228 = vstv %s227
        %v229 = vmul.f32 %v228, %v205
        %v230 = vmul.f32 %v228, %v212
        %s231 = sld [smem:[#allocation2 + $0x1]]
        %v232 = vstv %s231
        %v233 = vmul.f32 %v232, %v219
        %v234 = vmul.f32 %v232, %v226
        %v235 = vadd.f32 %v229, %v233
        %v236 = vadd.f32 %v230, %v234
        %s237 = sld [smem:[#allocation2 + $0x2]]
        %v238 = vstv %s237
        %v239 = vadd.f32 %v235, %v238
        %v240 = vadd.f32 %v236, %v238
        %v241 = vxor.u32 %v239, 2147483648
        %v242 = vxor.u32 %v240, 2147483648
        %v243 = vmul.f32 %v241, 1.442695
        %v244 = vpow.pop %v243
        %v245 = vmul.f32 %v242, 1.442695
        %v246 = vpow.pop %v245
        %v247 = vadd.f32 %v244, 1.0
        %v248 = vadd.f32 %v246, 1.0
        %v249 = vrcp.pop %v247
        %v250 = vmul.f32 1.0, %v249
        %v251 = vrcp.pop %v248
        %v252 = vmul.f32 1.0, %v251
        %v255 = vcombine.low %v250, %v252
        %v257 = vmul.f32 %v194, %v255
        %258 = vst [vmem:[%s191] sm:$0xff] %v257
        %s259 = sand.u32 %s91, 1
        %s260 = scalar_lea.sflag [#allocation4], %s259
        %s261 = sand.u32 %s91, 1
        %s262 = smul.addr %s261, 8
        %s263 = scalar_lea.vmem [#allocation7], %s262
        // Predicated region
        $region37: #{_pallas_spatial_attention.1} parent=27 // pred_check
          %p264 = pneg %p101
        $region38: #{_pallas_spatial_attention.1} parent=27 // pred_check_branch
          %266 = sbr.rel (%p264) target = $region40
        $region39: #{_pallas_spatial_attention.1} parent=27 // pred_region
          %s267 = smul.u32 2, %s25
          %s269 = ssub.s32 128, 128
          %270 = vsyncadd %s260, %s269
          %s271 = smul.addr %s24, 2
          %s272 = sadd.s32 %s267, %s271
          %s273 = smul.addr %s272, 64
          %s274 = scalar_lea.hbm %s2, %s273
          %s276 = sshll.u32 %s263, 4
          %s277 = int_to_ptr.vmem [resolvable:$true] %s276
          %279 = dma.vmem_to_hbm [thread:$0]  %s277, 128, %s274, %s260
        $region40: #{_pallas_spatial_attention.1} parent=27 // pred_fallthru
          _
      $region28: #{_pallas_spatial_attention.1} parent=5 // pred_fallthru
        _
      %p280 = scmp.le.s32.totalorder 2, %s15
      // Predicated region
      $region41: #{_pallas_spatial_attention.1} parent=5 // pred_check
        %p281 = pneg %p280
      $region42: #{_pallas_spatial_attention.1} parent=5 // pred_check_branch
        %283 = sbr.rel (%p281) target = $region44
      $region43: #{_pallas_spatial_attention.1} parent=5 // pred_region
        %s284 = ssub.s32 %s15, 2
        // Predicated region
        $region45: #{_pallas_spatial_attention.1} parent=43 // pred_check
          %p285 = pneg %p107
        $region46: #{_pallas_spatial_attention.1} parent=43 // pred_check_branch
          %287 = sbr.rel (%p285) target = $region48
        $region47: #{_pallas_spatial_attention.1} parent=43 // pred_region
          %s288 = sand.u32 %s92, 1
          %s289 = scalar_lea.sflag [#allocation4], %s288
          %s290 = sand.u32 %s92, 1
          %s291 = smul.addr %s290, 8
          %s292 = scalar_lea.vmem [#allocation7], %s291
          %293 = dma.done %s289, 128
        $region48: #{_pallas_spatial_attention.1} parent=43 // pred_fallthru
          _
      $region44: #{_pallas_spatial_attention.1} parent=5 // pred_fallthru
        _
    $region6: #{_pallas_spatial_attention.1} parent=1 // loop_footer
      %s19 = sadd.s32 1, %s15
    $region7: #{_pallas_spatial_attention.1} parent=1 // loop_footer_branch
      %14 = sbr.rel target = $region3
    $region8: #{_pallas_spatial_attention.1} parent=1 // loop_exit
      _
    %294 = vsyncpa [#allocation3], 1
    %s295 = scalar_lea.sflag [#allocation3], 1
    %296 = vsyncpa %s295, 1
    %297 = vsyncpa [#allocation4], 1
    %s298 = scalar_lea.sflag [#allocation4], 1
    %299 = vsyncpa %s298, 1
    %300 = vsyncpa [#allocation5], 1
    %s301 = scalar_lea.sflag [#allocation5], 1
    %302 = vsyncpa %s301, 1

</llo_original>
